<compile_context>
chip_gen: v5e
topology: v5e:2x2
jax: 0.10.0
libtpu: 0.0.40
codegen_flags: <defaults>
</compile_context>

<pallas_src>
import functools

import jax
import jax.numpy as jnp
from jax.experimental import pallas as pl
from jax.experimental.pallas import tpu as pltpu  # noqa: F401  (TPU backend assumed)

# ----------------------------- config ---------------------------------------
B, C, H, W = 2, 3, 16, 16          # small shapes; C=3 to match CLIP normalization
F_DIM = C * H * W                  # 768
D_EMB = 32                         # stand-in embedding dim (ViT-B/32 uses 512)
LOSS_WEIGHT = 1.0

CLIP_MEAN = jnp.array([0.48145466, 0.4578275, 0.40821073], dtype=jnp.float32)
CLIP_STD = jnp.array([0.26862954, 0.26130258, 0.27577711], dtype=jnp.float32)

# TODO(synk): transforms.Resize(224)/CenterCrop(224) (bilinear resample) and the
# real pretrained CLIP ViT-B/32 encoder have no clean Pallas equivalent here;
# spatial size is kept as-is and the encoder is a deterministic linear stand-in.


# ----------------------------- fused kernel ----------------------------------
def clip_loss_kernel(real_ref, gen_ref, scale_ref, shift_ref, w_ref, o_ref,
                     *, loss_weight):
    """real/gen: [B, F]; scale/shift: [1, F]; w: [F, D]; o: [1, 1] loss."""
    w = w_ref[...]                                   # one VMEM read, shared by both encodes
    real = real_ref[...]
    # generated-image preprocessing folded into a per-element affine:
    #   ((x + 1)/2 - mean_c) / std_c  ==  x * (0.5/std_c) + (0.5 - mean_c)/std_c
    gen = gen_ref[...] * scale_ref[...] + shift_ref[...]   # [1,F] broadcast over [B,F]

    # stand-in CLIP encoder: single weight load, embeddings stay in vregs/VMEM
    r = jnp.dot(real, w, preferred_element_type=jnp.float32)   # [B, D]
    g = jnp.dot(gen, w, preferred_element_type=jnp.float32)    # [B, D]

    # cosine similarity with F.normalize's eps:
    #   1/max(||x||, 1e-12) == rsqrt(max(||x||^2, 1e-24))
    rg = jnp.sum(r * g, axis=1, keepdims=True)                 # [B, 1]
    rr = jnp.sum(r * r, axis=1, keepdims=True)
    gg = jnp.sum(g * g, axis=1, keepdims=True)
    cos = (rg
           * jax.lax.rsqrt(jnp.maximum(rr, 1e-24))
           * jax.lax.rsqrt(jnp.maximum(gg, 1e-24)))            # [B, 1]
    # (the second renormalization inside F.cosine_similarity, eps=1e-8, is an
    #  exact no-op for unit-norm inputs and is omitted)

    mean_cos = jnp.sum(cos, axis=0, keepdims=True) * (1.0 / cos.shape[0])   # [1, 1]
    o_ref[...] = loss_weight * (1.0 - mean_cos)


# ----------------------------- wrapper ----------------------------------------
@jax.jit
def clip_similarity_loss(real_images, gen_images, w_enc):
    """Forward pass of CLIPSimilarityLoss (single fused pallas_call)."""
    b, c, h, w = real_images.shape
    hw = h * w
    f = c * hw

    real_flat = real_images.reshape(b, f).astype(jnp.float32)
    gen_flat = gen_images.reshape(b, f).astype(jnp.float32)

    # tiny [1, F] affine rows (constant-folded under jit; no [B,C,HW] broadcasts)
    scale = jnp.repeat(0.5 / CLIP_STD, hw).reshape(1, f).astype(jnp.float32)
    shift = jnp.repeat((0.5 - CLIP_MEAN) / CLIP_STD, hw).reshape(1, f).astype(jnp.float32)

    d = w_enc.shape[1]
    out = pl.pallas_call(
        functools.partial(clip_loss_kernel, loss_weight=float(LOSS_WEIGHT)),
        out_shape=jax.ShapeDtypeStruct((1, 1), jnp.float32),
        in_specs=[
            pl.BlockSpec((b, f), lambda: (0, 0)),      # real_flat
            pl.BlockSpec((b, f), lambda: (0, 0)),      # gen_flat
            pl.BlockSpec((1, f), lambda: (0, 0)),      # scale
            pl.BlockSpec((1, f), lambda: (0, 0)),      # shift
            pl.BlockSpec((f, d), lambda: (0, 0)),      # encoder weight
        ],
        out_specs=pl.BlockSpec((1, 1), lambda: (0, 0)),
    )(real_flat, gen_flat, scale, shift, w_enc.astype(jnp.float32))
    return out[0, 0]


# ----------------------------- pure-JAX reference ------------------------------
def _reference(real_images, gen_images, w_enc):
    """Exact arithmetic skeleton of the PyTorch module (double normalization)."""
    def norm_imgs(x):
        x01 = (x + 1.0) * 0.5
        return (x01 - CLIP_MEAN.reshape(1, C, 1, 1)) / CLIP_STD.reshape(1, C, 1, 1)

    re = real_images.reshape(B, -1) @ w_enc
    ge = norm_imgs(gen_images).reshape(B, -1) @ w_enc
    rn = re / jnp.maximum(jnp.linalg.norm(re, axis=1, keepdims=True), 1e-12)
    gn = ge / jnp.maximum(jnp.linalg.norm(ge, axis=1, keepdims=True), 1e-12)
    cos = jnp.sum(rn * gn, axis=1) / jnp.maximum(
        jnp.linalg.norm(rn, axis=1) * jnp.linalg.norm(gn, axis=1), 1e-8)
    return LOSS_WEIGHT * (1.0 - jnp.mean(cos))


if __name__ == "__main__":
    key = jax.random.PRNGKey(0)
    k_real, k_gen, k_w = jax.random.split(key, 3)

    # images in [-1, 1], NCHW
    real_images = jax.random.uniform(k_real, (B, C, H, W), jnp.float32, -1.0, 1.0)
    gen_images = jax.random.uniform(k_gen, (B, C, H, W), jnp.float32, -1.0, 1.0)

    # deterministic stand-in encoder weight [F, D]
    w_enc = jax.random.normal(k_w, (F_DIM, D_EMB), jnp.float32) / jnp.sqrt(F_DIM)

    loss = clip_similarity_loss(real_images, gen_images, w_enc)
    loss = jax.block_until_ready(loss)

    ref = _reference(real_images, gen_images, w_enc)
    assert jnp.isfinite(loss), "loss is not finite"
    assert jnp.allclose(loss, ref, atol=1e-4, rtol=1e-4), (loss, ref)

    print("KERNEL_OK")
</pallas_src>

<mosaic_0001>
module attributes {stable_mosaic.version = 11 : i64} {
  func.func @clip_loss_kernel(%arg0: memref<2x768xf32, #tpu.memory_space<vmem>>, %arg1: memref<2x768xf32, #tpu.memory_space<vmem>>, %arg2: memref<1x768xf32, #tpu.memory_space<vmem>>, %arg3: memref<1x768xf32, #tpu.memory_space<vmem>>, %arg4: memref<768x32xf32, #tpu.memory_space<vmem>>, %arg5: memref<1x1xf32, #tpu.memory_space<vmem>>) attributes {dimension_semantics = [], scalar_prefetch = 0 : i64, scratch_operands = 0 : i64, tpu.core_type = #tpu.core_type<tc>} {
    %c0 = arith.constant 0 : index
    %c0_0 = arith.constant 0 : index
    %0 = vector.load %arg4[%c0, %c0_0] : memref<768x32xf32, #tpu.memory_space<vmem>>, vector<768x32xf32>
    %c0_1 = arith.constant 0 : index
    %c0_2 = arith.constant 0 : index
    %1 = vector.load %arg0[%c0_1, %c0_2] : memref<2x768xf32, #tpu.memory_space<vmem>>, vector<2x768xf32>
    %c0_3 = arith.constant 0 : index
    %c0_4 = arith.constant 0 : index
    %2 = vector.load %arg1[%c0_3, %c0_4] : memref<2x768xf32, #tpu.memory_space<vmem>>, vector<2x768xf32>
    %c0_5 = arith.constant 0 : index
    %c0_6 = arith.constant 0 : index
    %3 = vector.load %arg2[%c0_5, %c0_6] : memref<1x768xf32, #tpu.memory_space<vmem>>, vector<1x768xf32>
    %4 = vector.broadcast %3 : vector<1x768xf32> to vector<2x768xf32>
    %5 = arith.mulf %2, %4 : vector<2x768xf32>
    %c0_7 = arith.constant 0 : index
    %c0_8 = arith.constant 0 : index
    %6 = vector.load %arg3[%c0_7, %c0_8] : memref<1x768xf32, #tpu.memory_space<vmem>>, vector<1x768xf32>
    %7 = vector.broadcast %6 : vector<1x768xf32> to vector<2x768xf32>
    %8 = arith.addf %5, %7 : vector<2x768xf32>
    %cst = arith.constant dense<0.000000e+00> : vector<2x32xf32>
    %9 = tpu.matmul %1, %0, %cst {dimension_numbers = #tpu.dot_dimension_numbers<[1], [0], [0], [1], [0, 0, 1, 1], [], []>} : vector<2x768xf32>, vector<768x32xf32>, vector<2x32xf32> -> vector<2x32xf32>
    %cst_9 = arith.constant dense<0.000000e+00> : vector<2x32xf32>
    %10 = tpu.matmul %8, %0, %cst_9 {dimension_numbers = #tpu.dot_dimension_numbers<[1], [0], [0], [1], [0, 0, 1, 1], [], []>} : vector<2x768xf32>, vector<768x32xf32>, vector<2x32xf32> -> vector<2x32xf32>
    %11 = arith.mulf %9, %10 : vector<2x32xf32>
    %cst_10 = arith.constant dense<0.000000e+00> : vector<2xf32>
    %12 = vector.multi_reduction <add>, %11, %cst_10 [1] : vector<2x32xf32> to vector<2xf32>
    %13 = vector.shape_cast %12 : vector<2xf32> to vector<2x1xf32>
    %14 = arith.mulf %9, %9 : vector<2x32xf32>
    %cst_11 = arith.constant dense<0.000000e+00> : vector<2xf32>
    %15 = vector.multi_reduction <add>, %14, %cst_11 [1] : vector<2x32xf32> to vector<2xf32>
    %16 = vector.shape_cast %15 : vector<2xf32> to vector<2x1xf32>
    %17 = arith.mulf %10, %10 : vector<2x32xf32>
    %cst_12 = arith.constant dense<0.000000e+00> : vector<2xf32>
    %18 = vector.multi_reduction <add>, %17, %cst_12 [1] : vector<2x32xf32> to vector<2xf32>
    %19 = vector.shape_cast %18 : vector<2xf32> to vector<2x1xf32>
    %cst_13 = arith.constant 1.000000e-24 : f32
    %20 = vector.broadcast %cst_13 : f32 to vector<2x1xf32>
    %21 = arith.maximumf %16, %20 : vector<2x1xf32>
    %22 = math.rsqrt %21 : vector<2x1xf32>
    %23 = arith.mulf %13, %22 : vector<2x1xf32>
    %cst_14 = arith.constant 1.000000e-24 : f32
    %24 = vector.broadcast %cst_14 : f32 to vector<2x1xf32>
    %25 = arith.maximumf %19, %24 : vector<2x1xf32>
    %26 = math.rsqrt %25 : vector<2x1xf32>
    %27 = arith.mulf %23, %26 : vector<2x1xf32>
    %cst_15 = arith.constant dense<0.000000e+00> : vector<1xf32>
    %28 = vector.multi_reduction <add>, %27, %cst_15 [0] : vector<2x1xf32> to vector<1xf32>
    %29 = vector.shape_cast %28 : vector<1xf32> to vector<1x1xf32>
    %cst_16 = arith.constant 5.000000e-01 : f32
    %30 = vector.broadcast %cst_16 : f32 to vector<1x1xf32>
    %31 = arith.mulf %29, %30 : vector<1x1xf32>
    %cst_17 = arith.constant 1.000000e+00 : f32
    %32 = vector.broadcast %cst_17 : f32 to vector<1x1xf32>
    %33 = arith.subf %32, %31 : vector<1x1xf32>
    %cst_18 = arith.constant 1.000000e+00 : f32
    %34 = vector.broadcast %cst_18 : f32 to vector<1x1xf32>
    %35 = arith.mulf %34, %33 : vector<1x1xf32>
    %c0_19 = arith.constant 0 : index
    %c0_20 = arith.constant 0 : index
    %36 = vector.load %arg5[%c0_19, %c0_20] : memref<1x1xf32, #tpu.memory_space<vmem>>, vector<1x1xf32>
    tpu.vector_store %arg5[%c0_19, %c0_20], %35 {strides = array<i32>} : memref<1x1xf32, #tpu.memory_space<vmem>>, vector<1x1xf32>,
    return
  }
}

</mosaic_0001>

<llo_original>
// kernel: clip_similarity_loss.1
$region0: #{clip_similarity_loss.1}
  #allocation0 [shape = 'u32[]', space=smem, size = 0x4, offset = 0x4, fixed_abs, tag = 'smem constant byte address 0x4 - core index']
  #allocation1 [shape = 'u32[72,128]{1,0:T(1,128)}', space=vmem, size = 0x9000, scoped, tag = 'internal scratch']
  %s0 = inlined_call_operand.vmem [shape: f32[2,768], index: 0, kind: input, shape index: {}]
  %s1 = inlined_call_operand.vmem [shape: f32[2,768], index: 1, kind: input, shape index: {}]
  %s2 = inlined_call_operand.vmem [shape: f32[1,768], index: 2, kind: input, shape index: {}]
  %s3 = inlined_call_operand.vmem [shape: f32[1,768], index: 3, kind: input, shape index: {}]
  %s4 = inlined_call_operand.vmem [shape: f32[768,32], index: 4, kind: input, shape index: {}]
  %s5 = inlined_call_operand.hbm [shape: f32[1,1], index: 5, kind: output, shape index: {}]
  %s6 = sld [smem:[#allocation0]]
  $region30: #{clip_similarity_loss.1} parent=0
    _
  %s8 = ssub.s32 1, %s6
  %s9 = scalar_select 0, %s8, %s6
  $region1: #{clip_similarity_loss.1} parent=0
    #allocation2 [shape = 'u8[512]{0}', space=vmem, size = 0x400, scoped, tag = 'output window, operand 0, single buffered']
    #allocation3 [shape = 's32[1]{0}', space=sflag, size = 0x4, scoped, tag = 'scoped memory for clip_similarity_loss.1']
    %10 = vsyncpa [#allocation3], 0
    // Predicated region
    $region2: #{clip_similarity_loss.1} parent=1 // pred_check
      _
    $region3: #{clip_similarity_loss.1} parent=1 // pred_check_branch
      %12 = sbr.rel (0) target = $region5
    $region4: #{clip_similarity_loss.1} parent=1 // pred_region
      _
    $region5: #{clip_similarity_loss.1} parent=1 // pred_fallthru
      _
    // Predicated region
    $region6: #{clip_similarity_loss.1} parent=1 // pred_check
      _
    $region7: #{clip_similarity_loss.1} parent=1 // pred_check_branch
      %14 = sbr.rel (0) target = $region9
    $region8: #{clip_similarity_loss.1} parent=1 // pred_region
      _
    $region9: #{clip_similarity_loss.1} parent=1 // pred_fallthru
      _
    // Predicated region
    $region10: #{clip_similarity_loss.1} parent=1 // pred_check
      _
    $region11: #{clip_similarity_loss.1} parent=1 // pred_check_branch
      %16 = sbr.rel (0) target = $region13
    $region12: #{clip_similarity_loss.1} parent=1 // pred_region
      _
    $region13: #{clip_similarity_loss.1} parent=1 // pred_fallthru
      _
    // Predicated region
    $region14: #{clip_similarity_loss.1} parent=1 // pred_check
      _
    $region15: #{clip_similarity_loss.1} parent=1 // pred_check_branch
      %18 = sbr.rel (0) target = $region17
    $region16: #{clip_similarity_loss.1} parent=1 // pred_region
      _
    $region17: #{clip_similarity_loss.1} parent=1 // pred_fallthru
      _
    // Predicated region
    $region18: #{clip_similarity_loss.1} parent=1 // pred_check
      _
    $region19: #{clip_similarity_loss.1} parent=1 // pred_check_branch
      %20 = sbr.rel (0) target = $region21
    $region20: #{clip_similarity_loss.1} parent=1 // pred_region
      _
    $region21: #{clip_similarity_loss.1} parent=1 // pred_fallthru
      _
    %v21 = vld [vmem:[%s4] sm:$0xff]
    %v22 = vld [vmem:[%s4 + $0x8] sm:$0xff]
    %v23 = vld [vmem:[%s4 + $0x10] sm:$0xff]
    %v24 = vld [vmem:[%s4 + $0x18] sm:$0xff]
    %v25 = vld [vmem:[%s4 + $0x20] sm:$0xff]
    %v26 = vld [vmem:[%s4 + $0x28] sm:$0xff]
    %v27 = vld [vmem:[%s4 + $0x30] sm:$0xff]
    %v28 = vld [vmem:[%s4 + $0x38] sm:$0xff]
    %v29 = vld [vmem:[%s4 + $0x40] sm:$0xff]
    %v30 = vld [vmem:[%s4 + $0x48] sm:$0xff]
    %v31 = vld [vmem:[%s4 + $0x50] sm:$0xff]
    %v32 = vld [vmem:[%s4 + $0x58] sm:$0xff]
    %v33 = vld [vmem:[%s4 + $0x60] sm:$0xff]
    %v34 = vld [vmem:[%s4 + $0x68] sm:$0xff]
    %v35 = vld [vmem:[%s4 + $0x70] sm:$0xff]
    %v36 = vld [vmem:[%s4 + $0x78] sm:$0xff]
    %v37 = vld [vmem:[%s4 + $0x80] sm:$0xff]
    %v38 = vld [vmem:[%s4 + $0x88] sm:$0xff]
    %v39 = vld [vmem:[%s4 + $0x90] sm:$0xff]
    %v40 = vld [vmem:[%s4 + $0x98] sm:$0xff]
    %v41 = vld [vmem:[%s4 + $0xa0] sm:$0xff]
    %v42 = vld [vmem:[%s4 + $0xa8] sm:$0xff]
    %v43 = vld [vmem:[%s4 + $0xb0] sm:$0xff]
    %v44 = vld [vmem:[%s4 + $0xb8] sm:$0xff]
    %v45 = vld [vmem:[%s4 + $0xc0] sm:$0xff]
    %v46 = vld [vmem:[%s4 + $0xc8] sm:$0xff]
    %v47 = vld [vmem:[%s4 + $0xd0] sm:$0xff]
    %v48 = vld [vmem:[%s4 + $0xd8] sm:$0xff]
    %v49 = vld [vmem:[%s4 + $0xe0] sm:$0xff]
    %v50 = vld [vmem:[%s4 + $0xe8] sm:$0xff]
    %v51 = vld [vmem:[%s4 + $0xf0] sm:$0xff]
    %v52 = vld [vmem:[%s4 + $0xf8] sm:$0xff]
    %v53 = vld [vmem:[%s4 + $0x100] sm:$0xff]
    %v54 = vld [vmem:[%s4 + $0x108] sm:$0xff]
    %v55 = vld [vmem:[%s4 + $0x110] sm:$0xff]
    %v56 = vld [vmem:[%s4 + $0x118] sm:$0xff]
    %v57 = vld [vmem:[%s4 + $0x120] sm:$0xff]
    %v58 = vld [vmem:[%s4 + $0x128] sm:$0xff]
    %v59 = vld [vmem:[%s4 + $0x130] sm:$0xff]
    %v60 = vld [vmem:[%s4 + $0x138] sm:$0xff]
    %v61 = vld [vmem:[%s4 + $0x140] sm:$0xff]
    %v62 = vld [vmem:[%s4 + $0x148] sm:$0xff]
    %v63 = vld [vmem:[%s4 + $0x150] sm:$0xff]
    %v64 = vld [vmem:[%s4 + $0x158] sm:$0xff]
    %v65 = vld [vmem:[%s4 + $0x160] sm:$0xff]
    %v66 = vld [vmem:[%s4 + $0x168] sm:$0xff]
    %v67 = vld [vmem:[%s4 + $0x170] sm:$0xff]
    %v68 = vld [vmem:[%s4 + $0x178] sm:$0xff]
    %v69 = vld [vmem:[%s4 + $0x180] sm:$0xff]
    %v70 = vld [vmem:[%s4 + $0x188] sm:$0xff]
    %v71 = vld [vmem:[%s4 + $0x190] sm:$0xff]
    %v72 = vld [vmem:[%s4 + $0x198] sm:$0xff]
    %v73 = vld [vmem:[%s4 + $0x1a0] sm:$0xff]
    %v74 = vld [vmem:[%s4 + $0x1a8] sm:$0xff]
    %v75 = vld [vmem:[%s4 + $0x1b0] sm:$0xff]
    %v76 = vld [vmem:[%s4 + $0x1b8] sm:$0xff]
    %v77 = vld [vmem:[%s4 + $0x1c0] sm:$0xff]
    %v78 = vld [vmem:[%s4 + $0x1c8] sm:$0xff]
    %v79 = vld [vmem:[%s4 + $0x1d0] sm:$0xff]
    %v80 = vld [vmem:[%s4 + $0x1d8] sm:$0xff]
    %v81 = vld [vmem:[%s4 + $0x1e0] sm:$0xff]
    %v82 = vld [vmem:[%s4 + $0x1e8] sm:$0xff]
    %v83 = vld [vmem:[%s4 + $0x1f0] sm:$0xff]
    %v84 = vld [vmem:[%s4 + $0x1f8] sm:$0xff]
    %v85 = vld [vmem:[%s4 + $0x200] sm:$0xff]
    %v86 = vld [vmem:[%s4 + $0x208] sm:$0xff]
    %v87 = vld [vmem:[%s4 + $0x210] sm:$0xff]
    %v88 = vld [vmem:[%s4 + $0x218] sm:$0xff]
    %v89 = vld [vmem:[%s4 + $0x220] sm:$0xff]
    %v90 = vld [vmem:[%s4 + $0x228] sm:$0xff]
    %v91 = vld [vmem:[%s4 + $0x230] sm:$0xff]
    %v92 = vld [vmem:[%s4 + $0x238] sm:$0xff]
    %v93 = vld [vmem:[%s4 + $0x240] sm:$0xff]
    %v94 = vld [vmem:[%s4 + $0x248] sm:$0xff]
    %v95 = vld [vmem:[%s4 + $0x250] sm:$0xff]
    %v96 = vld [vmem:[%s4 + $0x258] sm:$0xff]
    %v97 = vld [vmem:[%s4 + $0x260] sm:$0xff]
    %v98 = vld [vmem:[%s4 + $0x268] sm:$0xff]
    %v99 = vld [vmem:[%s4 + $0x270] sm:$0xff]
    %v100 = vld [vmem:[%s4 + $0x278] sm:$0xff]
    %v101 = vld [vmem:[%s4 + $0x280] sm:$0xff]
    %v102 = vld [vmem:[%s4 + $0x288] sm:$0xff]
    %v103 = vld [vmem:[%s4 + $0x290] sm:$0xff]
    %v104 = vld [vmem:[%s4 + $0x298] sm:$0xff]
    %v105 = vld [vmem:[%s4 + $0x2a0] sm:$0xff]
    %v106 = vld [vmem:[%s4 + $0x2a8] sm:$0xff]
    %v107 = vld [vmem:[%s4 + $0x2b0] sm:$0xff]
    %v108 = vld [vmem:[%s4 + $0x2b8] sm:$0xff]
    %v109 = vld [vmem:[%s4 + $0x2c0] sm:$0xff]
    %v110 = vld [vmem:[%s4 + $0x2c8] sm:$0xff]
    %v111 = vld [vmem:[%s4 + $0x2d0] sm:$0xff]
    %v112 = vld [vmem:[%s4 + $0x2d8] sm:$0xff]
    %v113 = vld [vmem:[%s4 + $0x2e0] sm:$0xff]
    %v114 = vld [vmem:[%s4 + $0x2e8] sm:$0xff]
    %v115 = vld [vmem:[%s4 + $0x2f0] sm:$0xff]
    %v116 = vld [vmem:[%s4 + $0x2f8] sm:$0xff]
    %v117 = vld [vmem:[%s0] sm:$0xff]
    %v118 = vld [vmem:[%s0 + $0x8] sm:$0xf]
    %v119 = vld [vmem:[%s1] sm:$0xff]
    %v120 = vld [vmem:[%s1 + $0x8] sm:$0xf]
    %v121 = vld [vmem:[%s2] sm:$0x3f]
    %v123 = vperm.slane %v121, 0
    %v124 = vperm.slane %v121, 1
    %v125 = vperm.slane %v121, 2
    %v126 = vperm.slane %v121, 3
    %v127 = vperm.slane %v121, 4
    %v128 = vperm.slane %v121, 5
    %v129 = vrot.slane %v124, 6
    %v130 = vrot.slane %v125, 4
    %v131 = vrot.slane %v126, 2
    %v132 = vrot.slane %v128, 6
    %vm133 = vcmask 1041408
    %v134 = vsel %vm133, %v123, %v129
    %vm135 = vcmask 1045508
    %v136 = vsel %vm135, %v130, %v131
    %vm137 = vcmask 1043456
    %v138 = vsel %vm137, %v134, %v136
    %v139 = vsel %vm133, %v127, %v132
    %v142 = vmul.f32 %v119, %v138
    %v143 = vmul.f32 %v120, %v139
    %v144 = vld [vmem:[%s3] sm:$0x3f]
    %v146 = vperm.slane %v144, 0
    %v147 = vperm.slane %v144, 1
    %v148 = vperm.slane %v144, 2
    %v149 = vperm.slane %v144, 3
    %v150 = vperm.slane %v144, 4
    %v151 = vperm.slane %v144, 5
    %v152 = vrot.slane %v147, 6
    %v153 = vrot.slane %v148, 4
    %v154 = vrot.slane %v149, 2
    %v155 = vrot.slane %v151, 6
    %v156 = vsel %vm133, %v146, %v152
    %v157 = vsel %vm135, %v153, %v154
    %v158 = vsel %vm137, %v156, %v157
    %v159 = vsel %vm133, %v150, %v155
    %v162 = vadd.f32 %v142, %v158
    %v163 = vadd.f32 %v143, %v159
    %166 = vst [vmem:[#allocation1] ss:$4 sm:$0xff] %v117
    %s167 = scalar_lea.vmem [#allocation1], 32
    %168 = vst [vmem:[%s167] ss:$4 sm:$0xff] %v118
    %v169 = vld.sshfl [vmem:[#allocation1] sm:$0xff pattern:$0x73625140]
    %v170 = vld.sshfl [vmem:[#allocation1 + $0x8] sm:$0xff pattern:$0x73625140]
    %v171 = vld.sshfl [vmem:[#allocation1 + $0x10] sm:$0xff pattern:$0x73625140]
    %v172 = vld.sshfl [vmem:[#allocation1 + $0x18] sm:$0xff pattern:$0x73625140]
    %v173 = vld.sshfl [vmem:[#allocation1 + $0x20] sm:$0xff pattern:$0x73625140]
    %v174 = vld.sshfl [vmem:[#allocation1 + $0x28] sm:$0xff pattern:$0x73625140]
    %181 = vmatpush.msra.mxu0 %v36
    %182 = vmatpush.msra.mxu0 %v35
    %183 = vmatpush.msra.mxu0 %v34
    %184 = vmatpush.msra.mxu0 %v33
    %185 = vmatpush.msra.mxu0 %v32
    %186 = vmatpush.msra.mxu0 %v31
    %187 = vmatpush.msra.mxu0 %v30
    %188 = vmatpush.msra.mxu0 %v29
    %189 = vmatpush.msra.mxu0 %v28
    %190 = vmatpush.msra.mxu0 %v27
    %191 = vmatpush.msra.mxu0 %v26
    %192 = vmatpush.msra.mxu0 %v25
    %193 = vmatpush.msra.mxu0 %v24
    %194 = vmatpush.msra.mxu0 %v23
    %195 = vmatpush.msra.mxu0 %v22
    %196 = vmatpush.msra.mxu0 %v21
    %197 = vmatmul.f32.gmra.mxu0 %v169
    %v198 = vpop.f32.mrf.mxu0
    %v199 = vadd.f32 0.0, %v198
    %200 = vdwg.mxu0
    %201 = vmatpush.msra.mxu0 %v52
    %202 = vmatpush.msra.mxu0 %v51
    %203 = vmatpush.msra.mxu0 %v50
    %204 = vmatpush.msra.mxu0 %v49
    %205 = vmatpush.msra.mxu0 %v48
    %206 = vmatpush.msra.mxu0 %v47
    %207 = vmatpush.msra.mxu0 %v46
    %208 = vmatpush.msra.mxu0 %v45
    %209 = vmatpush.msra.mxu0 %v44
    %210 = vmatpush.msra.mxu0 %v43
    %211 = vmatpush.msra.mxu0 %v42
    %212 = vmatpush.msra.mxu0 %v41
    %213 = vmatpush.msra.mxu0 %v40
    %214 = vmatpush.msra.mxu0 %v39
    %215 = vmatpush.msra.mxu0 %v38
    %216 = vmatpush.msra.mxu0 %v37
    %217 = vmatmul.f32.gmra.mxu0 %v170
    %v218 = vpop.f32.mrf.mxu0
    %v219 = vadd.f32 %v199, %v218
    %220 = vdwg.mxu0
    %221 = vmatpush.msra.mxu0 %v68
    %222 = vmatpush.msra.mxu0 %v67
    %223 = vmatpush.msra.mxu0 %v66
    %224 = vmatpush.msra.mxu0 %v65
    %225 = vmatpush.msra.mxu0 %v64
    %226 = vmatpush.msra.mxu0 %v63
    %227 = vmatpush.msra.mxu0 %v62
    %228 = vmatpush.msra.mxu0 %v61
    %229 = vmatpush.msra.mxu0 %v60
    %230 = vmatpush.msra.mxu0 %v59
    %231 = vmatpush.msra.mxu0 %v58
    %232 = vmatpush.msra.mxu0 %v57
    %233 = vmatpush.msra.mxu0 %v56
    %234 = vmatpush.msra.mxu0 %v55
    %235 = vmatpush.msra.mxu0 %v54
    %236 = vmatpush.msra.mxu0 %v53
    %237 = vmatmul.f32.gmra.mxu0 %v171
    %v238 = vpop.f32.mrf.mxu0
    %v239 = vadd.f32 %v219, %v238
    %240 = vdwg.mxu0
    %241 = vmatpush.msra.mxu0 %v84
    %242 = vmatpush.msra.mxu0 %v83
    %243 = vmatpush.msra.mxu0 %v82
    %244 = vmatpush.msra.mxu0 %v81
    %245 = vmatpush.msra.mxu0 %v80
    %246 = vmatpush.msra.mxu0 %v79
    %247 = vmatpush.msra.mxu0 %v78
    %248 = vmatpush.msra.mxu0 %v77
    %249 = vmatpush.msra.mxu0 %v76
    %250 = vmatpush.msra.mxu0 %v75
    %251 = vmatpush.msra.mxu0 %v74
    %252 = vmatpush.msra.mxu0 %v73
    %253 = vmatpush.msra.mxu0 %v72
    %254 = vmatpush.msra.mxu0 %v71
    %255 = vmatpush.msra.mxu0 %v70
    %256 = vmatpush.msra.mxu0 %v69
    %257 = vmatmul.f32.gmra.mxu0 %v172
    %v258 = vpop.f32.mrf.mxu0
    %v259 = vadd.f32 %v239, %v258
    %260 = vdwg.mxu0
    %261 = vmatpush.msra.mxu0 %v100
    %262 = vmatpush.msra.mxu0 %v99
    %263 = vmatpush.msra.mxu0 %v98
    %264 = vmatpush.msra.mxu0 %v97
    %265 = vmatpush.msra.mxu0 %v96
    %266 = vmatpush.msra.mxu0 %v95
    %267 = vmatpush.msra.mxu0 %v94
    %268 = vmatpush.msra.mxu0 %v93
    %269 = vmatpush.msra.mxu0 %v92
    %270 = vmatpush.msra.mxu0 %v91
    %271 = vmatpush.msra.mxu0 %v90
    %272 = vmatpush.msra.mxu0 %v89
    %273 = vmatpush.msra.mxu0 %v88
    %274 = vmatpush.msra.mxu0 %v87
    %275 = vmatpush.msra.mxu0 %v86
    %276 = vmatpush.msra.mxu0 %v85
    %277 = vmatmul.f32.gmra.mxu0 %v173
    %v278 = vpop.f32.mrf.mxu0
    %v279 = vadd.f32 %v259, %v278
    %280 = vdwg.mxu0
    %281 = vmatpush.msra.mxu0 %v116
    %282 = vmatpush.msra.mxu0 %v115
    %283 = vmatpush.msra.mxu0 %v114
    %284 = vmatpush.msra.mxu0 %v113
    %285 = vmatpush.msra.mxu0 %v112
    %286 = vmatpush.msra.mxu0 %v111
    %287 = vmatpush.msra.mxu0 %v110
    %288 = vmatpush.msra.mxu0 %v109
    %289 = vmatpush.msra.mxu0 %v108
    %290 = vmatpush.msra.mxu0 %v107
    %291 = vmatpush.msra.mxu0 %v106
    %292 = vmatpush.msra.mxu0 %v105
    %293 = vmatpush.msra.mxu0 %v104
    %294 = vmatpush.msra.mxu0 %v103
    %295 = vmatpush.msra.mxu0 %v102
    %296 = vmatpush.msra.mxu0 %v101
    %297 = vmatmul.f32.gmra.mxu0 %v174
    %v298 = vpop.f32.mrf.mxu0
    %v299 = vadd.f32 %v279, %v298
    %300 = vdwg.mxu0
    %303 = vst [vmem:[#allocation1] ss:$4 sm:$0xff] %v162
    %s304 = scalar_lea.vmem [#allocation1], 32
    %305 = vst [vmem:[%s304] ss:$4 sm:$0xff] %v163
    %v306 = vld.sshfl [vmem:[#allocation1] sm:$0xff pattern:$0x73625140]
    %v307 = vld.sshfl [vmem:[#allocation1 + $0x8] sm:$0xff pattern:$0x73625140]
    %v308 = vld.sshfl [vmem:[#allocation1 + $0x10] sm:$0xff pattern:$0x73625140]
    %v309 = vld.sshfl [vmem:[#allocation1 + $0x18] sm:$0xff pattern:$0x73625140]
    %v310 = vld.sshfl [vmem:[#allocation1 + $0x20] sm:$0xff pattern:$0x73625140]
    %v311 = vld.sshfl [vmem:[#allocation1 + $0x28] sm:$0xff pattern:$0x73625140]
    %318 = vmatpush.msra.mxu0 %v36
    %319 = vmatpush.msra.mxu0 %v35
    %320 = vmatpush.msra.mxu0 %v34
    %321 = vmatpush.msra.mxu0 %v33
    %322 = vmatpush.msra.mxu0 %v32
    %323 = vmatpush.msra.mxu0 %v31
    %324 = vmatpush.msra.mxu0 %v30
    %325 = vmatpush.msra.mxu0 %v29
    %326 = vmatpush.msra.mxu0 %v28
    %327 = vmatpush.msra.mxu0 %v27
    %328 = vmatpush.msra.mxu0 %v26
    %329 = vmatpush.msra.mxu0 %v25
    %330 = vmatpush.msra.mxu0 %v24
    %331 = vmatpush.msra.mxu0 %v23
    %332 = vmatpush.msra.mxu0 %v22
    %333 = vmatpush.msra.mxu0 %v21
    %334 = vmatmul.f32.gmra.mxu0 %v306
    %v335 = vpop.f32.mrf.mxu0
    %v336 = vadd.f32 0.0, %v335
    %337 = vdwg.mxu0
    %338 = vmatpush.msra.mxu0 %v52
    %339 = vmatpush.msra.mxu0 %v51
    %340 = vmatpush.msra.mxu0 %v50
    %341 = vmatpush.msra.mxu0 %v49
    %342 = vmatpush.msra.mxu0 %v48
    %343 = vmatpush.msra.mxu0 %v47
    %344 = vmatpush.msra.mxu0 %v46
    %345 = vmatpush.msra.mxu0 %v45
    %346 = vmatpush.msra.mxu0 %v44
    %347 = vmatpush.msra.mxu0 %v43
    %348 = vmatpush.msra.mxu0 %v42
    %349 = vmatpush.msra.mxu0 %v41
    %350 = vmatpush.msra.mxu0 %v40
    %351 = vmatpush.msra.mxu0 %v39
    %352 = vmatpush.msra.mxu0 %v38
    %353 = vmatpush.msra.mxu0 %v37
    %354 = vmatmul.f32.gmra.mxu0 %v307
    %v355 = vpop.f32.mrf.mxu0
    %v356 = vadd.f32 %v336, %v355
    %357 = vdwg.mxu0
    %358 = vmatpush.msra.mxu0 %v68
    %359 = vmatpush.msra.mxu0 %v67
    %360 = vmatpush.msra.mxu0 %v66
    %361 = vmatpush.msra.mxu0 %v65
    %362 = vmatpush.msra.mxu0 %v64
    %363 = vmatpush.msra.mxu0 %v63
    %364 = vmatpush.msra.mxu0 %v62
    %365 = vmatpush.msra.mxu0 %v61
    %366 = vmatpush.msra.mxu0 %v60
    %367 = vmatpush.msra.mxu0 %v59
    %368 = vmatpush.msra.mxu0 %v58
    %369 = vmatpush.msra.mxu0 %v57
    %370 = vmatpush.msra.mxu0 %v56
    %371 = vmatpush.msra.mxu0 %v55
    %372 = vmatpush.msra.mxu0 %v54
    %373 = vmatpush.msra.mxu0 %v53
    %374 = vmatmul.f32.gmra.mxu0 %v308
    %v375 = vpop.f32.mrf.mxu0
    %v376 = vadd.f32 %v356, %v375
    %377 = vdwg.mxu0
    %378 = vmatpush.msra.mxu0 %v84
    %379 = vmatpush.msra.mxu0 %v83
    %380 = vmatpush.msra.mxu0 %v82
    %381 = vmatpush.msra.mxu0 %v81
    %382 = vmatpush.msra.mxu0 %v80
    %383 = vmatpush.msra.mxu0 %v79
    %384 = vmatpush.msra.mxu0 %v78
    %385 = vmatpush.msra.mxu0 %v77
    %386 = vmatpush.msra.mxu0 %v76
    %387 = vmatpush.msra.mxu0 %v75
    %388 = vmatpush.msra.mxu0 %v74
    %389 = vmatpush.msra.mxu0 %v73
    %390 = vmatpush.msra.mxu0 %v72
    %391 = vmatpush.msra.mxu0 %v71
    %392 = vmatpush.msra.mxu0 %v70
    %393 = vmatpush.msra.mxu0 %v69
    %394 = vmatmul.f32.gmra.mxu0 %v309
    %v395 = vpop.f32.mrf.mxu0
    %v396 = vadd.f32 %v376, %v395
    %397 = vdwg.mxu0
    %398 = vmatpush.msra.mxu0 %v100
    %399 = vmatpush.msra.mxu0 %v99
    %400 = vmatpush.msra.mxu0 %v98
    %401 = vmatpush.msra.mxu0 %v97
    %402 = vmatpush.msra.mxu0 %v96
    %403 = vmatpush.msra.mxu0 %v95
    %404 = vmatpush.msra.mxu0 %v94
    %405 = vmatpush.msra.mxu0 %v93
    %406 = vmatpush.msra.mxu0 %v92
    %407 = vmatpush.msra.mxu0 %v91
    %408 = vmatpush.msra.mxu0 %v90
    %409 = vmatpush.msra.mxu0 %v89
    %410 = vmatpush.msra.mxu0 %v88
    %411 = vmatpush.msra.mxu0 %v87
    %412 = vmatpush.msra.mxu0 %v86
    %413 = vmatpush.msra.mxu0 %v85
    %414 = vmatmul.f32.gmra.mxu0 %v310
    %v415 = vpop.f32.mrf.mxu0
    %v416 = vadd.f32 %v396, %v415
    %417 = vdwg.mxu0
    %418 = vmatpush.msra.mxu0 %v116
    %419 = vmatpush.msra.mxu0 %v115
    %420 = vmatpush.msra.mxu0 %v114
    %421 = vmatpush.msra.mxu0 %v113
    %422 = vmatpush.msra.mxu0 %v112
    %423 = vmatpush.msra.mxu0 %v111
    %424 = vmatpush.msra.mxu0 %v110
    %425 = vmatpush.msra.mxu0 %v109
    %426 = vmatpush.msra.mxu0 %v108
    %427 = vmatpush.msra.mxu0 %v107
    %428 = vmatpush.msra.mxu0 %v106
    %429 = vmatpush.msra.mxu0 %v105
    %430 = vmatpush.msra.mxu0 %v104
    %431 = vmatpush.msra.mxu0 %v103
    %432 = vmatpush.msra.mxu0 %v102
    %433 = vmatpush.msra.mxu0 %v101
    %434 = vmatmul.f32.gmra.mxu0 %v311
    %v435 = vpop.f32.mrf.mxu0
    %v436 = vadd.f32 %v416, %v435
    %437 = vdwg.mxu0
    %v438 = vmul.f32 %v299, %v436
    %vm439 = vcmask 254976
    %v440 = vsel %vm439, %v438, 0.0
    %441 = vadd.xlane.f32.xlu0 %v440
    %v442 = vpop.xlane.xlu0 %441
    %v443 = vmul.f32 %v299, %v299
    %v444 = vsel %vm439, %v443, 0.0
    %445 = vadd.xlane.f32.xlu0 %v444
    %v446 = vpop.xlane.xlu0 %445
    %v447 = vmul.f32 %v436, %v436
    %v448 = vsel %vm439, %v447, 0.0
    %449 = vadd.xlane.f32.xlu0 %v448
    %v450 = vpop.xlane.xlu0 %449
    %v451 = vmax.f32 %v446, 1e-24
    %v452 = vrsqrt.pop %v451
    %v453 = vmul.f32 %v452, %v451
    %v454 = vmul.f32 %v453, %v452
    %v455 = vmul.f32 0.5, %v454
    %v456 = vsub.f32 1.5, %v455
    %v457 = vmul.f32 %v452, %v456
    %vm458 = vweird.f32 %v451
    %vm459 = vweird.f32 %v452
    %vm460 = vmor %vm458, %vm459
    %v461 = vsel %vm460, %v452, %v457
    %v462 = vmul.f32 %v442, %v461
    %v463 = vmax.f32 %v450, 1e-24
    %v464 = vrsqrt.pop %v463
    %v465 = vmul.f32 %v464, %v463
    %v466 = vmul.f32 %v465, %v464
    %v467 = vmul.f32 0.5, %v466
    %v468 = vsub.f32 1.5, %v467
    %v469 = vmul.f32 %v464, %v468
    %vm470 = vweird.f32 %v463
    %vm471 = vweird.f32 %v464
    %vm472 = vmor %vm470, %vm471
    %v473 = vsel %vm472, %v464, %v469
    %v474 = vmul.f32 %v462, %v473
    %v475 = vsel %vm133, %v474, 0.0
    %v476 = vrot.slane %v475, 4
    %v477 = vadd.f32 %v475, %v476
    %v478 = vrot.slane %v477, 2
    %v479 = vadd.f32 %v477, %v478
    %v480 = vrot.slane %v479, 1
    %v481 = vadd.f32 %v479, %v480
    %v482 = vmul.f32 %v481, 0.5
    %v483 = vsub.f32 1.0, %v482
    %vm484 = vcmask 0
    %485 = vst.msk [vmem:[#allocation2] sm:$0x1] %vm484, %v483
    // Predicated region
    $region22: #{clip_similarity_loss.1} parent=1 // pred_check
      _
    $region23: #{clip_similarity_loss.1} parent=1 // pred_check_branch
      %487 = sbr.rel (0) target = $region25
    $region24: #{clip_similarity_loss.1} parent=1 // pred_region
      %489 = vsyncadd [#allocation3], 0
      %s491 = sshll.u32 [#allocation2], 4
      %s492 = int_to_ptr.vmem [resolvable:$true] %s491
      %s493 = sshll.u32 %s5, 4
      %s494 = int_to_ptr.hbm [resolvable:$true] %s493
      %496 = dma.vmem_to_hbm [thread:$0]  %s492, 16, %s494, [#allocation3]
    $region25: #{clip_similarity_loss.1} parent=1 // pred_fallthru
      _
    // Predicated region
    $region26: #{clip_similarity_loss.1} parent=1 // pred_check
      _
    $region27: #{clip_similarity_loss.1} parent=1 // pred_check_branch
      %498 = sbr.rel (0) target = $region29
    $region28: #{clip_similarity_loss.1} parent=1 // pred_region
      %500 = dma.done [#allocation3], 16
    $region29: #{clip_similarity_loss.1} parent=1 // pred_fallthru
      _
    %501 = vsyncpa [#allocation3], 1

</llo_original>
